<compile_context>
chip_gen: v6e
topology: v6e:2x2x1
jax: 0.10.0
libtpu: 0.0.40
codegen_flags: <defaults>
</compile_context>

<pallas_src>
import functools

import jax
import jax.numpy as jnp
from jax.experimental import pallas as pl
from jax.experimental.pallas import tpu as pltpu


def _round_up(x, m):
    return (x + m - 1) // m * m


def _pick_block(n_pad, target):
    """Largest multiple of 128 that divides n_pad and is <= target (>=128)."""
    best = 128
    m = 128
    while m <= min(target, n_pad):
        if n_pad % m == 0:
            best = m
        m += 128
    return best


# ------------------------------- kernels ------------------------------------


def _prop_kernel(norm_ref, a_ref, f_ref, o_ref, acc_ref, *, block_k,
                 f_resident):
    """Intermediate hop on the scaled state h = norm*feat:
       h_out = deg^-1 * (A @ h_in)   (== norm * feat_out)."""
    kk = pl.program_id(1)

    @pl.when(kk == 0)
    def _():
        acc_ref[...] = jnp.zeros_like(acc_ref)

    if f_resident:
        f = f_ref[pl.ds(pl.multiple_of(kk * block_k, block_k), block_k), :]
    else:
        f = f_ref[...]
    acc_ref[...] += jnp.dot(a_ref[...].astype(jnp.bfloat16), f,
                            preferred_element_type=jnp.float32)

    @pl.when(kk == pl.num_programs(1) - 1)
    def _():
        nrm = norm_ref[...]                       # [block_m, 1] f32 (dst rows)
        o_ref[...] = (acc_ref[...] * (nrm * nrm)).astype(o_ref.dtype)


def _prop_mlp_kernel(norm_ref, a_ref, f_ref, w1t_ref, b1_ref, w2t_ref, b2_ref,
                     o_ref, acc_ref, *, block_k, f_resident):
    """Last hop fused with the MLP head:
       feat = norm * (A @ h_in);  out = sigmoid(relu(feat@W1^T+b1)@W2^T+b2)."""
    kk = pl.program_id(1)

    @pl.when(kk == 0)
    def _():
        acc_ref[...] = jnp.zeros_like(acc_ref)

    if f_resident:
        f = f_ref[pl.ds(pl.multiple_of(kk * block_k, block_k), block_k), :]
    else:
        f = f_ref[...]
    acc_ref[...] += jnp.dot(a_ref[...].astype(jnp.bfloat16), f,
                            preferred_element_type=jnp.float32)

    @pl.when(kk == pl.num_programs(1) - 1)
    def _():
        feat = (acc_ref[...] * norm_ref[...]).astype(jnp.bfloat16)
        h = jnp.dot(feat, w1t_ref[...],
                    preferred_element_type=jnp.float32) + b1_ref[...]
        h = jnp.maximum(h, 0.0)
        h = jnp.dot(h.astype(jnp.bfloat16), w2t_ref[...],
                    preferred_element_type=jnp.float32) + b2_ref[...]
        # exp goes to the EUP; exact reciprocal keeps f32 sigmoid parity.
        o_ref[...] = pl.reciprocal(1.0 + jnp.exp(-h))


# ------------------------------- wrapper ------------------------------------


def sgc2onv_forward(adj, feat, w1, b1, w2, b2, *, k=1,
                    block_m=None, block_k=None):
    """adj: [N,N] dense {0,1} adjacency (A[dst,src]); feat: [N,Fin];
    w1: [H,Fin], b1: [H]; w2: [Fout,H], b2: [Fout]  (PyTorch Linear layout)."""
    if k < 1:
        raise ValueError("k must be >= 1")
    n, fin = feat.shape
    hid = w1.shape[0]
    fout = w2.shape[0]

    # --- wrapper glue: O(N^2) reads of adj only, no f32 N^2 intermediate -----
    adj32 = jnp.asarray(adj, jnp.float32)
    deg = jnp.maximum(jnp.sum(adj32, axis=1, keepdims=True), 1.0)  # in-degrees
    norm = jax.lax.rsqrt(deg)                                      # [N,1] f32

    # --- TPU-friendly padding: N only to 128, lane-dense feature dims --------
    n_pad = _round_up(n, 128)
    fin_p = _round_up(fin, 128)
    hid_p = _round_up(hid, 128)
    fout_p = _round_up(fout, 128)

    # Megacore-aware dst-row tile (>=2 tiles when possible); big reduction tile.
    if block_m is None:
        block_m = _pick_block(n_pad, min(512, max(128, n_pad // 2)))
    if block_k is None:
        block_k = _pick_block(n_pad, 4096)
    assert block_m % 128 == 0 and block_k % 128 == 0
    assert n_pad % block_m == 0 and n_pad % block_k == 0

    # {0,1} adjacency as int8 (halves the dominant HBM stream vs bf16).
    a_p = jnp.zeros((n_pad, n_pad), jnp.int8).at[:n, :n].set(
        adj32.astype(jnp.int8))
    norm_p = jnp.zeros((n_pad, 1), jnp.float32).at[:n, :].set(norm)
    # Carried state h0 = norm * feat (source-side norm folded in, O(N*Fin)).
    h0 = jnp.zeros((n_pad, fin_p), jnp.bfloat16).at[:n, :fin].set(
        (jnp.asarray(feat, jnp.float32) * norm).astype(jnp.bfloat16))
    w1t_p = jnp.zeros((fin_p, hid_p), jnp.bfloat16).at[:fin, :hid].set(
        jnp.asarray(w1, jnp.float32).T.astype(jnp.bfloat16))
    b1_p = jnp.zeros((1, hid_p), jnp.float32).at[0, :hid].set(
        jnp.asarray(b1, jnp.float32))
    w2t_p = jnp.zeros((hid_p, fout_p), jnp.bfloat16).at[:hid, :fout].set(
        jnp.asarray(w2, jnp.float32).T.astype(jnp.bfloat16))
    b2_p = jnp.zeros((1, fout_p), jnp.float32).at[0, :fout].set(
        jnp.asarray(b2, jnp.float32))

    # Keep the whole feature matrix VMEM-resident when small enough:
    # loaded from HBM once per hop instead of once per dst-row tile.
    f_resident = (n_pad * fin_p * 2) <= (8 * 1024 * 1024)

    grid = (n_pad // block_m, n_pad // block_k)   # (dst-row tiles, reduction)
    cparams = pltpu.CompilerParams(
        dimension_semantics=("parallel", "arbitrary"),  # rows shard across TCs
        # Explicit limit: v5e's scoped default is only 16 MiB; 48 MiB still
        # leaves headroom under v7x's 64 MiB physical VMEM.
        vmem_limit_bytes=48 * 1024 * 1024,
    )
    norm_spec = pl.BlockSpec((block_m, 1), lambda i, kk: (i, 0))
    a_spec = pl.BlockSpec((block_m, block_k), lambda i, kk: (i, kk))
    if f_resident:
        f_spec = pl.BlockSpec((n_pad, fin_p), lambda i, kk: (0, 0))
    else:
        f_spec = pl.BlockSpec((block_k, fin_p), lambda i, kk: (kk, 0))
    full = lambda r, c: pl.BlockSpec((r, c), lambda i, kk: (0, 0))

    # --- hops 1 .. k-1 : h <- deg^-1 * (A @ h) --------------------------------
    h = h0
    if k > 1:
        prop = pl.pallas_call(
            functools.partial(_prop_kernel, block_k=block_k,
                              f_resident=f_resident),
            out_shape=jax.ShapeDtypeStruct((n_pad, fin_p), jnp.bfloat16),
            grid_spec=pltpu.PrefetchScalarGridSpec(
                num_scalar_prefetch=0,
                grid=grid,
                in_specs=[norm_spec, a_spec, f_spec],
                out_specs=pl.BlockSpec((block_m, fin_p), lambda i, kk: (i, 0)),
                scratch_shapes=[pltpu.VMEM((block_m, fin_p), jnp.float32)],
            ),
            compiler_params=cparams,
        )
        for _ in range(k - 1):
            h = prop(norm_p, a_p, h)
        # NOTE: for graphs whose padded int8 A fits VMEM, all k hops could be
        # fused into one pallas_call with A held in scratch (saves k-1 A reads).

    # --- last hop fused with the MLP head + sigmoid ---------------------------
    out_p = pl.pallas_call(
        functools.partial(_prop_mlp_kernel, block_k=block_k,
                          f_resident=f_resident),
        out_shape=jax.ShapeDtypeStruct((n_pad, fout_p), jnp.float32),
        grid_spec=pltpu.PrefetchScalarGridSpec(
            num_scalar_prefetch=0,
            grid=grid,
            in_specs=[norm_spec, a_spec, f_spec,
                      full(fin_p, hid_p), full(1, hid_p),
                      full(hid_p, fout_p), full(1, fout_p)],
            out_specs=pl.BlockSpec((block_m, fout_p), lambda i, kk: (i, 0)),
            scratch_shapes=[pltpu.VMEM((block_m, fin_p), jnp.float32)],
        ),
        compiler_params=cparams,
    )(norm_p, a_p, h, w1t_p, b1_p, w2t_p, b2_p)

    return out_p[:n, :fout]


def _xavier_uniform(key, fan_out, fan_in):
    bound = (6.0 / (fan_in + fan_out)) ** 0.5
    return jax.random.uniform(key, (fan_out, fan_in), jnp.float32, -bound, bound)


if __name__ == "__main__":
    # Small synthetic graph; block_m=block_k=128 with N=256 exercises a 2x2
    # tile grid (2 dst-row tiles + a real 2-step reduction over source tiles).
    N, IN_FEATS, HID_FEATS, OUT_FEATS, K = 256, 8, 32, 4, 2

    key = jax.random.PRNGKey(0)
    k_adj, k_feat, k_w1, k_w2 = jax.random.split(key, 4)

    # Random directed graph with self-loops (so no 0-in-degree nodes).
    rand_edges = (jax.random.uniform(k_adj, (N, N)) < 0.05).astype(jnp.float32)
    adj = jnp.maximum(rand_edges, jnp.eye(N, dtype=jnp.float32))   # A[dst, src]

    feat = jax.random.normal(k_feat, (N, IN_FEATS), jnp.float32)

    # reset_parameters(): xavier_uniform_ weights, zero biases.
    w1 = _xavier_uniform(k_w1, HID_FEATS, IN_FEATS)   # fc1.weight: [hid, in]
    b1 = jnp.zeros((HID_FEATS,), jnp.float32)
    w2 = _xavier_uniform(k_w2, OUT_FEATS, HID_FEATS)  # fc2.weight: [out, hid]
    b2 = jnp.zeros((OUT_FEATS,), jnp.float32)

    out = sgc2onv_forward(adj, feat, w1, b1, w2, b2, k=K,
                          block_m=128, block_k=128)
    out = jax.block_until_ready(out)
    assert out.shape == (N, OUT_FEATS)

    # (a) f32 reference of the module's math (loose tol: kernel carries bf16
    #     features / weights through the MXU).
    deg = jnp.maximum(adj.sum(axis=1, keepdims=True), 1.0)
    nrm = deg ** -0.5
    f_ref = feat
    for _ in range(K):
        f_ref = nrm * (adj @ (f_ref * nrm))
    ref_f32 = jax.nn.sigmoid(jnp.maximum(f_ref @ w1.T + b1, 0.0) @ w2.T + b2)
    err_a = float(jnp.max(jnp.abs(out - ref_f32)))
    assert jnp.allclose(out, ref_f32, atol=5e-2), err_a

    # (b) parity against a JAX replay of the kernel's exact mixed precision:
    #     {0,1} bf16 A, bf16 scaled feature state, f32 accumulation, f32 norms.
    nrm32 = jax.lax.rsqrt(deg)
    a_bf = adj.astype(jnp.bfloat16)                       # exact for {0,1}
    hb = (feat * nrm32).astype(jnp.bfloat16)
    for _ in range(K - 1):
        acc = jnp.dot(a_bf, hb, preferred_element_type=jnp.float32)
        hb = (acc * (nrm32 * nrm32)).astype(jnp.bfloat16)
    acc = jnp.dot(a_bf, hb, preferred_element_type=jnp.float32)
    fb = (acc * nrm32).astype(jnp.bfloat16)
    zb = jnp.dot(fb, w1.T.astype(jnp.bfloat16),
                 preferred_element_type=jnp.float32) + b1
    zb = jnp.maximum(zb, 0.0)
    zb = jnp.dot(zb.astype(jnp.bfloat16), w2.T.astype(jnp.bfloat16),
                 preferred_element_type=jnp.float32) + b2
    ref_bf = 1.0 / (1.0 + jnp.exp(-zb))
    err_b = float(jnp.max(jnp.abs(out - ref_bf)))
    assert jnp.allclose(out, ref_bf, atol=5e-3, rtol=5e-3), err_b

    print("KERNEL_OK")
</pallas_src>

<mosaic_0001>
module attributes {stable_mosaic.version = 11 : i64} {
  func.func @_prop_kernel(%arg0: i32, %arg1: i32, %arg2: memref<128x1xf32, #tpu.memory_space<vmem>>, %arg3: memref<128x128xi8, #tpu.memory_space<vmem>>, %arg4: memref<256x128xbf16, #tpu.memory_space<vmem>>, %arg5: memref<128x128xbf16, #tpu.memory_space<vmem>>, %arg6: memref<128x128xf32, #tpu.memory_space<vmem>>) attributes {dimension_semantics = [#tpu.dimension_semantics<parallel>, #tpu.dimension_semantics<arbitrary>], iteration_bounds = array<i64: 2, 2>, scalar_prefetch = 0 : i64, scratch_operands = 1 : i64, tpu.core_type = #tpu.core_type<tc>, window_params = [{transform_indices = @transform_0, window_bounds = array<i64: 128, 1>}, {transform_indices = @transform_1, window_bounds = array<i64: 128, 128>}, {pipeline_mode = #tpu.pipeline_mode<synchronous>, transform_indices = @transform_2, window_bounds = array<i64: 256, 128>}, {transform_indices = @transform_3, window_bounds = array<i64: 128, 128>}]} {
    %c0_i32 = arith.constant 0 : i32
    %0 = arith.cmpi eq, %arg1, %c0_i32 : i32
    %1 = arith.extui %0 : i1 to i32
    %c0_i32_0 = arith.constant 0 : i32
    %2 = arith.cmpi ne, %1, %c0_i32_0 : i32
    scf.if %2 {
      %cst_8 = arith.constant 0.000000e+00 : f32
      %16 = vector.broadcast %cst_8 : f32 to vector<128x128xf32>
      %c0_9 = arith.constant 0 : index
      %c0_10 = arith.constant 0 : index
      %17 = vector.load %arg6[%c0_9, %c0_10] : memref<128x128xf32, #tpu.memory_space<vmem>>, vector<128x128xf32>
      tpu.vector_store %arg6[%c0_9, %c0_10], %16 {strides = array<i32>} : memref<128x128xf32, #tpu.memory_space<vmem>>, vector<128x128xf32>,
    } else {
    }
    %c128_i32 = arith.constant 128 : i32
    %3 = arith.muli %arg1, %c128_i32 : i32
    %4 = tpu.assume_multiple %3, 128 : i32
    %5 = arith.index_cast %4 : i32 to index
    %c0 = arith.constant 0 : index
    %6 = vector.load %arg4[%5, %c0] : memref<256x128xbf16, #tpu.memory_space<vmem>>, vector<128x128xbf16>
    %c0_1 = arith.constant 0 : index
    %c0_2 = arith.constant 0 : index
    %7 = vector.load %arg6[%c0_1, %c0_2] : memref<128x128xf32, #tpu.memory_space<vmem>>, vector<128x128xf32>
    %c0_3 = arith.constant 0 : index
    %c0_4 = arith.constant 0 : index
    %8 = vector.load %arg3[%c0_3, %c0_4] : memref<128x128xi8, #tpu.memory_space<vmem>>, vector<128x128xi8>
    %9 = arith.sitofp %8 : vector<128x128xi8> to vector<128x128xbf16>
    %cst = arith.constant dense<0.000000e+00> : vector<128x128xf32>
    %10 = tpu.matmul %9, %6, %cst {dimension_numbers = #tpu.dot_dimension_numbers<[1], [0], [0], [1], [0, 0, 1, 1], [], []>} : vector<128x128xbf16>, vector<128x128xbf16>, vector<128x128xf32> -> vector<128x128xf32>
    %11 = arith.addf %7, %10 : vector<128x128xf32>
    %c0_5 = arith.constant 0 : index
    %c0_6 = arith.constant 0 : index
    %12 = vector.load %arg6[%c0_5, %c0_6] : memref<128x128xf32, #tpu.memory_space<vmem>>, vector<128x128xf32>
    tpu.vector_store %arg6[%c0_5, %c0_6], %11 {strides = array<i32>} : memref<128x128xf32, #tpu.memory_space<vmem>>, vector<128x128xf32>,
    %c1_i32 = arith.constant 1 : i32
    %13 = arith.cmpi eq, %arg1, %c1_i32 : i32
    %14 = arith.extui %13 : i1 to i32
    %c0_i32_7 = arith.constant 0 : i32
    %15 = arith.cmpi ne, %14, %c0_i32_7 : i32
    scf.if %15 {
      %c0_8 = arith.constant 0 : index
      %c0_9 = arith.constant 0 : index
      %16 = vector.load %arg2[%c0_8, %c0_9] : memref<128x1xf32, #tpu.memory_space<vmem>>, vector<128x1xf32>
      %c0_10 = arith.constant 0 : index
      %c0_11 = arith.constant 0 : index
      %17 = vector.load %arg6[%c0_10, %c0_11] : memref<128x128xf32, #tpu.memory_space<vmem>>, vector<128x128xf32>
      %18 = arith.mulf %16, %16 : vector<128x1xf32>
      %19 = vector.broadcast %18 : vector<128x1xf32> to vector<128x128xf32>
      %20 = arith.mulf %17, %19 : vector<128x128xf32>
      %21 = arith.truncf %20 : vector<128x128xf32> to vector<128x128xbf16>
      %c0_12 = arith.constant 0 : index
      %c0_13 = arith.constant 0 : index
      %22 = vector.load %arg5[%c0_12, %c0_13] : memref<128x128xbf16, #tpu.memory_space<vmem>>, vector<128x128xbf16>
      tpu.vector_store %arg5[%c0_12, %c0_13], %21 {strides = array<i32>} : memref<128x128xbf16, #tpu.memory_space<vmem>>, vector<128x128xbf16>,
    } else {
    }
    return
  }
  func.func @transform_0(%arg0: i32, %arg1: i32) -> (i32, i32) {
    %c0_i32 = arith.constant 0 : i32
    %c0_i32_0 = arith.constant 0 : i32
    return %arg0, %c0_i32 : i32, i32
  }
  func.func @transform_1(%arg0: i32, %arg1: i32) -> (i32, i32) {
    %c0_i32 = arith.constant 0 : i32
    return %arg0, %arg1 : i32, i32
  }
  func.func @transform_2(%arg0: i32, %arg1: i32) -> (i32, i32) {
    %c0_i32 = arith.constant 0 : i32
    %c0_i32_0 = arith.constant 0 : i32
    %c0_i32_1 = arith.constant 0 : i32
    return %c0_i32, %c0_i32_0 : i32, i32
  }
  func.func @transform_3(%arg0: i32, %arg1: i32) -> (i32, i32) {
    %c0_i32 = arith.constant 0 : i32
    %c0_i32_0 = arith.constant 0 : i32
    return %arg0, %c0_i32 : i32, i32
  }
}

</mosaic_0001>

<llo_original>
// kernel: tpu_custom_call.1
$region0: #{tpu_custom_call.1}
  #allocation0 [shape = 'u32[]', space=smem, size = 0x4, offset = 0x4, fixed_abs, tag = 'smem constant byte address 0x4 - core index']
  #allocation1 [shape = 'u32[144,128]{1,0:T(1,128)}', space=vmem, size = 0x12000, scoped, tag = 'internal scratch']
  #allocation2 [shape = 'f32[128,128]{1,0:T(8,128)}', space=vmem, size = 0x10000, scoped, tag = 'scratch operand']
  %s0 = inlined_call_operand.vmem [shape: f32[256,1], index: 0, kind: input, shape index: {}]
  %s1 = inlined_call_operand.vmem [shape: s8[256,256], index: 1, kind: input, shape index: {}]
  %s2 = inlined_call_operand.vmem [shape: bf16[256,128], index: 2, kind: input, shape index: {}]
  %s3 = inlined_call_operand.hbm [shape: bf16[256,128], index: 3, kind: output, shape index: {}]
  %s4 = sld [smem:[#allocation0]]
  $region91: #{tpu_custom_call.1} parent=0
    _
  %s6 = ssub.s32 1, %s4
  %s7 = scalar_select 0, %s6, %s4
  $region1: #{tpu_custom_call.1} parent=0
    #allocation3 [shape = 'u8[32768]{0}', space=vmem, size = 0x8000, scoped, tag = 'input window, operand 1']
    #allocation4 [shape = 'u8[65536]{0}', space=vmem, size = 0x10000, scoped, tag = 'output window, operand 0']
    #allocation5 [shape = 's32[2]{0}', space=sflag, size = 0x8, scoped, tag = 'scoped memory for tpu_custom_call.1']
    %8 = vsyncpa [#allocation5], 0
    %s9 = scalar_lea.sflag [#allocation5], 1
    %10 = vsyncpa %s9, 0
    loop: start=0, step=1, limit=6
    $region2: #{tpu_custom_call.1} parent=1 // loop_pre_header
      _
    $region3: #{tpu_custom_call.1} parent=1 // loop_header
      %s12 = sphi 0, %s16
      %p13 = scmp.ge.s32.totalorder %s12, 6
      %s19 = sphi 0, %s31
      %s20 = sphi 0, %s27
      %s21 = sphi 0, %s19
      %s22 = sphi 0, %s20
      %s23 = sphi 0, %s21
      %s24 = sphi 0, %s22
      %s34 = sphi 0, %s36
      %s37 = sphi 0, %s34
      %s38 = sphi 0, %s37
      %s54 = sphi 0, %s38
      %s62 = sphi 0, %s64
      %s65 = sphi 0, %s62
      %s66 = sphi 0, %s65
      %s82 = sphi 0, %s66
      %s86 = sphi 0, %s86
      %s88 = sphi 0, %s86
      %s89 = sphi 0, %s88
      %s103 = sphi 0, %s89
      %s109 = sphi 0, %s111
      %s112 = sphi 0, %s109
      %s113 = sphi 0, %s112
      %s129 = sphi 0, %s113
    $region4: #{tpu_custom_call.1} parent=1 // loop_header_branch
      %15 = sbr.rel (%p13) target = $region8
    $region5: #{tpu_custom_call.1} parent=1 // loop_body
      %s17 = ssub.s32 %s12, 1
      %s18 = ssub.s32 %s12, 2
      %s25 = sadd.s32 1, %s20
      %p26 = scmp.ge.s32.totalorder %s25, 2
      %s27 = scalar_select %p26, 0, %s25
      %s28 = sadd.s32 1, %s19
      %s29 = scalar_select %p26, %s28, %s19
      %p30 = scmp.ge.s32.totalorder %s29, 2
      %s31 = scalar_select %p30, 0, %s29
      %s32 = ssub.s32 %s19, %s31
      %p33 = scmp.eq.s32.totalorder %s32, 0
      %s35 = sadd.s32 %s34, 1
      %s36 = scalar_select %p33, %s34, %s35
      %p39 = pneg %p33
      %p40 = scmp.eq.s32.totalorder %s12, 3
      %p41 = por %p39, %p40
      %p42 = scmp.ne.s32.totalorder %s34, %s37
      %p43 = scmp.eq.s32.totalorder %s12, 0
      %p44 = por %p42, %p43
      %p45 = scmp.ne.s32.totalorder %s34, %s37
      %p46 = scmp.eq.s32.totalorder %s17, 3
      %p47 = por %p45, %p46
      %p48 = scmp.ne.s32.totalorder %s37, %s38
      %p49 = scmp.eq.s32.totalorder %s17, 0
      %p50 = por %p48, %p49
      %p51 = scmp.ne.s32.totalorder %s37, %s38
      %p52 = scmp.eq.s32.totalorder %s18, 3
      %p53 = por %p51, %p52
      %p55 = scmp.ne.s32.totalorder %s38, %s54
      %p56 = scmp.eq.s32.totalorder %s18, 0
      %p57 = por %p55, %p56
      %s58 = ssub.s32 %s19, %s31
      %s59 = ssub.s32 %s20, %s27
      %s60 = sor.u32 %s58, %s59
      %p61 = scmp.eq.s32.totalorder %s60, 0
      %s63 = sadd.s32 %s62, 1
      %s64 = scalar_select %p61, %s62, %s63
      %p67 = pneg %p61
      %p68 = scmp.eq.s32.totalorder %s12, 3
      %p69 = por %p67, %p68
      %p70 = scmp.ne.s32.totalorder %s62, %s65
      %p71 = scmp.eq.s32.totalorder %s12, 0
      %p72 = por %p70, %p71
      %p73 = scmp.ne.s32.totalorder %s62, %s65
      %p74 = scmp.eq.s32.totalorder %s17, 3
      %p75 = por %p73, %p74
      %p76 = scmp.ne.s32.totalorder %s65, %s66
      %p77 = scmp.eq.s32.totalorder %s17, 0
      %p78 = por %p76, %p77
      %p79 = scmp.ne.s32.totalorder %s65, %s66
      %p80 = scmp.eq.s32.totalorder %s18, 3
      %p81 = por %p79, %p80
      %p83 = scmp.ne.s32.totalorder %s66, %s82
      %p84 = scmp.eq.s32.totalorder %s18, 0
      %p85 = por %p83, %p84
      %s87 = sadd.s32 %s86, 1
      %p90 = scmp.eq.s32.totalorder %s12, 3
      %p91 = scmp.ne.s32.totalorder %s86, %s88
      %p92 = scmp.eq.s32.totalorder %s12, 0
      %p93 = por %p91, %p92
      %p94 = scmp.ne.s32.totalorder %s86, %s88
      %p95 = scmp.eq.s32.totalorder %s17, 3
      %p96 = por %p94, %p95
      %p97 = scmp.ne.s32.totalorder %s88, %s89
      %p98 = scmp.eq.s32.totalorder %s17, 0
      %p99 = por %p97, %p98
      %p100 = scmp.ne.s32.totalorder %s88, %s89
      %p101 = scmp.eq.s32.totalorder %s18, 3
      %p102 = por %p100, %p101
      %p104 = scmp.ne.s32.totalorder %s89, %s103
      %p105 = scmp.eq.s32.totalorder %s18, 0
      %p106 = por %p104, %p105
      %s107 = ssub.s32 %s19, %s31
      %p108 = scmp.eq.s32.totalorder %s107, 0
      %s110 = sadd.s32 %s109, 1
      %s111 = scalar_select %p108, %s109, %s110
      %p114 = pneg %p108
      %p115 = scmp.eq.s32.totalorder %s12, 3
      %p116 = por %p114, %p115
      %p117 = scmp.ne.s32.totalorder %s109, %s112
      %p118 = scmp.eq.s32.totalorder %s12, 0
      %p119 = por %p117, %p118
      %p120 = scmp.ne.s32.totalorder %s109, %s112
      %p121 = scmp.eq.s32.totalorder %s17, 3
      %p122 = por %p120, %p121
      %p123 = scmp.ne.s32.totalorder %s112, %s113
      %p124 = scmp.eq.s32.totalorder %s17, 0
      %p125 = por %p123, %p124
      %p126 = scmp.ne.s32.totalorder %s112, %s113
      %p127 = scmp.eq.s32.totalorder %s18, 3
      %p128 = por %p126, %p127
      %p130 = scmp.ne.s32.totalorder %s113, %s129
      %p131 = scmp.eq.s32.totalorder %s18, 0
      %p132 = por %p130, %p131
      %p133 = scmp.le.s32.totalorder 1, %s12
      %p134 = scmp.lt.s32.totalorder %s12, 5
      %p135 = pnand %p133, %p134
      %p136 = pneg %p135
      // Predicated region
      $region9: #{tpu_custom_call.1} parent=5 // pred_check
        _
      $region10: #{tpu_custom_call.1} parent=5 // pred_check_branch
        %138 = sbr.rel (%p135) target = $region12
      $region11: #{tpu_custom_call.1} parent=5 // pred_region
        %s139 = ssub.s32 %s12, 1
        // Predicated region
        $region13: #{tpu_custom_call.1} parent=11 // pred_check
          %p140 = pneg %p99
        $region14: #{tpu_custom_call.1} parent=11 // pred_check_branch
          %142 = sbr.rel (%p140) target = $region16
        $region15: #{tpu_custom_call.1} parent=11 // pred_region
          _
        $region16: #{tpu_custom_call.1} parent=11 // pred_fallthru
          _
      $region12: #{tpu_custom_call.1} parent=5 // pred_fallthru
        _
      %p143 = scmp.lt.s32.totalorder %s12, 4
      // Predicated region
      $region17: #{tpu_custom_call.1} parent=5 // pred_check
        %p144 = pneg %p143
      $region18: #{tpu_custom_call.1} parent=5 // pred_check_branch
        %146 = sbr.rel (%p144) target = $region20
      $region19: #{tpu_custom_call.1} parent=5 // pred_region
        // Predicated region
        $region21: #{tpu_custom_call.1} parent=19 // pred_check
          %p147 = pneg %p44
        $region22: #{tpu_custom_call.1} parent=19 // pred_check_branch
          %149 = sbr.rel (%p147) target = $region24
        $region23: #{tpu_custom_call.1} parent=19 // pred_region
          %s150 = smul.u32 16, %s19
          %p151 = scmp.lt.s32.totalorder %s150, 31
          %s152 = scalar_select %p151, %s150, 31
          %s153 = smul.addr %s152, 8
          %s154 = scalar_lea.vmem %s0, %s153
          %s155 = smul.u32 16, %s19
        $region24: #{tpu_custom_call.1} parent=19 // pred_fallthru
          _
        // Predicated region
        $region25: #{tpu_custom_call.1} parent=19 // pred_check
          %p156 = pneg %p72
        $region26: #{tpu_custom_call.1} parent=19 // pred_check_branch
          %158 = sbr.rel (%p156) target = $region28
        $region27: #{tpu_custom_call.1} parent=19 // pred_region
          %s159 = sand.u32 %s62, 1
          %s160 = sand.u32 %s62, 1
          %s161 = smul.addr %s160, 32
          %s162 = scalar_lea.vmem [#allocation3], %s161
          %s163 = smul.u32 4, %s19
          %s164 = smul.addr %s163, 2
          %s165 = sadd.s32 %s20, %s164
          %s166 = smul.addr %s165, 8
          %s167 = scalar_lea.vmem %s1, %s166
          // Predicated region
          $region29: #{tpu_custom_call.1} parent=27 // pred_check
            _
          $region30: #{tpu_custom_call.1} parent=27 // pred_check_branch
            %169 = sbr.rel (0) target = $region32
          $region31: #{tpu_custom_call.1} parent=27 // pred_region
            // Predicated region
            $region33: #{tpu_custom_call.1} parent=31 // pred_check
              _
            $region34: #{tpu_custom_call.1} parent=31 // pred_check_branch
              %171 = sbr.rel (0) target = $region36
            $region35: #{tpu_custom_call.1} parent=31 // pred_region
              // Predicated region
              $region48: #{tpu_custom_call.1} parent=35 // pred_check
                _
              $region49: #{tpu_custom_call.1} parent=35 // pred_check_branch
                %193 = sbr.rel (0) target = $region51
              $region50: #{tpu_custom_call.1} parent=35 // pred_region
                loop: start=0, step=1, limit=1
                $region52: #{tpu_custom_call.1} parent=50 // loop_pre_header
                  _
                $region53: #{tpu_custom_call.1} parent=50 // loop_header
                  %s195 = sphi 0, %s199
                  %p196 = scmp.ge.s32.totalorder %s195, 1
                  %s200 = sphi %s167, %s167
                  %s201 = sphi %s162, %s162
                $region54: #{tpu_custom_call.1} parent=50 // loop_header_branch
                  %198 = sbr.rel (%p196) target = $region58
                $region55: #{tpu_custom_call.1} parent=50 // loop_body
                  %v202 = vld [vmem:[%s200] sm:$0xff]
                  %203 = vst [vmem:[%s201] sm:$0xff] %v202
                  %v204 = vld [vmem:[%s200 + $0x10] sm:$0xff]
                  %205 = vst [vmem:[%s201 + $0x8] sm:$0xff] %v204
                  %v206 = vld [vmem:[%s200 + $0x20] sm:$0xff]
                  %207 = vst [vmem:[%s201 + $0x10] sm:$0xff] %v206
                  %v208 = vld [vmem:[%s200 + $0x30] sm:$0xff]
                  %209 = vst [vmem:[%s201 + $0x18] sm:$0xff] %v208
                $region56: #{tpu_custom_call.1} parent=50 // loop_footer
                  %s199 = sadd.s32 1, %s195
                $region57: #{tpu_custom_call.1} parent=50 // loop_footer_branch
                  %194 = sbr.rel target = $region53
                $region58: #{tpu_custom_call.1} parent=50 // loop_exit
                  _
              $region51: #{tpu_custom_call.1} parent=35 // pred_fallthru
                _
              // Predicated region
              $region59: #{tpu_custom_call.1} parent=35 // pred_check
                _
              $region60: #{tpu_custom_call.1} parent=35 // pred_check_branch
                %211 = sbr.rel target = $region62
              $region61: #{tpu_custom_call.1} parent=35 // pred_region
                _
              $region62: #{tpu_custom_call.1} parent=35 // pred_fallthru
                _
            $region36: #{tpu_custom_call.1} parent=31 // pred_fallthru
              _
            // Predicated region
            $region37: #{tpu_custom_call.1} parent=31 // pred_check
              _
            $region38: #{tpu_custom_call.1} parent=31 // pred_check_branch
              %173 = sbr.rel target = $region40
            $region39: #{tpu_custom_call.1} parent=31 // pred_region
              %s175 = ssub.s32 256, 1
              loop: start=0, step=1, limit=1
              $region41: #{tpu_custom_call.1} parent=39 // loop_pre_header
                _
              $region42: #{tpu_custom_call.1} parent=39 // loop_header
                %s177 = sphi 0, %s181
                %p178 = scmp.ge.s32.totalorder %s177, 1
                %s182 = sphi %s167, %s167
                %s183 = sphi %s162, %s162
              $region43: #{tpu_custom_call.1} parent=39 // loop_header_branch
                %180 = sbr.rel (%p178) target = $region47
              $region44: #{tpu_custom_call.1} parent=39 // loop_body
                %v184 = vld [vmem:[%s182] sm:%s175]
                %185 = vst [vmem:[%s183] sm:%s175] %v184
                %v186 = vld [vmem:[%s182 + $0x10] sm:%s175]
                %187 = vst [vmem:[%s183 + $0x8] sm:%s175] %v186
                %v188 = vld [vmem:[%s182 + $0x20] sm:%s175]
                %189 = vst [vmem:[%s183 + $0x10] sm:%s175] %v188
                %v190 = vld [vmem:[%s182 + $0x30] sm:%s175]
                %191 = vst [vmem:[%s183 + $0x18] sm:%s175] %v190
              $region45: #{tpu_custom_call.1} parent=39 // loop_footer
                %s181 = sadd.s32 1, %s177
              $region46: #{tpu_custom_call.1} parent=39 // loop_footer_branch
                %176 = sbr.rel target = $region42
              $region47: #{tpu_custom_call.1} parent=39 // loop_exit
                _
            $region40: #{tpu_custom_call.1} parent=31 // pred_fallthru
              _
          $region32: #{tpu_custom_call.1} parent=27 // pred_fallthru
            _
          %212 = vnop
        $region28: #{tpu_custom_call.1} parent=19 // pred_fallthru
          _
      $region20: #{tpu_custom_call.1} parent=5 // pred_fallthru
        _
      %p213 = scmp.le.s32.totalorder 1, %s12
      %p214 = scmp.lt.s32.totalorder %s12, 5
      %p215 = pnand %p213, %p214
      %p216 = pneg %p215
      // Predicated region
      $region63: #{tpu_custom_call.1} parent=5 // pred_check
        _
      $region64: #{tpu_custom_call.1} parent=5 // pred_check_branch
        %218 = sbr.rel (%p215) target = $region66
      $region65: #{tpu_custom_call.1} parent=5 // pred_region
        %s219 = ssub.s32 %s12, 1
        %s220 = sand.u32 %s65, 1
        %s221 = sand.u32 %s65, 1
        %s222 = smul.addr %s221, 32
        %s223 = scalar_lea.vmem [#allocation3], %s222
        // Predicated region
        $region67: #{tpu_custom_call.1} parent=65 // pred_check
          %p224 = pneg %p78
        $region68: #{tpu_custom_call.1} parent=65 // pred_check_branch
          %226 = sbr.rel (%p224) target = $region70
        $region69: #{tpu_custom_call.1} parent=65 // pred_region
          _
        $region70: #{tpu_custom_call.1} parent=65 // pred_fallthru
          _
        %s227 = smul.u32 16, %s21
        %p228 = scmp.lt.s32.totalorder %s227, 31
        %s229 = scalar_select %p228, %s227, 31
        %s230 = smul.addr %s229, 8
        %s231 = scalar_lea.vmem %s0, %s230
        %p232 = pneg %p50
        %p233 = pneg %p47
        %s234 = sand.u32 %s65, 1
        %s235 = sand.u32 %s65, 1
        %s236 = smul.addr %s235, 32
        %s237 = scalar_lea.vmem [#allocation3], %s236
        %p238 = pneg %p78
        %p239 = pneg %p75
        %p240 = pneg %p99
        %p241 = pneg %p96
        %p242 = pneg %p125
        %p243 = pneg %p122
        %s244 = sand.u32 %s112, 1
        %s245 = scalar_lea.sflag [#allocation5], %s244
        %s246 = sand.u32 %s112, 1
        %s247 = smul.addr %s246, 64
        %s248 = scalar_lea.vmem [#allocation4], %s247
        %s249 = smul.u32 16, %s21
        %p250 = scmp.lt.s32.totalorder %s249, 31
        %s251 = scalar_select %p250, %s249, 31
        %s252 = smul.addr %s251, 8
        %s253 = scalar_lea.vmem %s0, %s252
        %s254 = smul.u32 16, %s21
        %s255 = smul.u32 4, %s21
        %s256 = smul.u32 16, %s21
        %p258 = scmp.eq.s32.totalorder %s22, 0
        // Predicated region
        $region71: #{tpu_custom_call.1} parent=65 // pred_check
          %p259 = pneg %p258
        $region72: #{tpu_custom_call.1} parent=65 // pred_check_branch
          %261 = sbr.rel (%p259) target = $region74
        $region73: #{tpu_custom_call.1} parent=65 // pred_region
          %262 = vst [vmem:[#allocation2] sm:$0xff] 0.0
          %263 = vst [vmem:[#allocation2 + $0x8] sm:$0xff] 0.0
          %264 = vst [vmem:[#allocation2 + $0x10] sm:$0xff] 0.0
          %265 = vst [vmem:[#allocation2 + $0x18] sm:$0xff] 0.0
          %266 = vst [vmem:[#allocation2 + $0x20] sm:$0xff] 0.0
          %267 = vst [vmem:[#allocation2 + $0x28] sm:$0xff] 0.0
          %268 = vst [vmem:[#allocation2 + $0x30] sm:$0xff] 0.0
          %269 = vst [vmem:[#allocation2 + $0x38] sm:$0xff] 0.0
          %270 = vst [vmem:[#allocation2 + $0x40] sm:$0xff] 0.0
          %271 = vst [vmem:[#allocation2 + $0x48] sm:$0xff] 0.0
          %272 = vst [vmem:[#allocation2 + $0x50] sm:$0xff] 0.0
          %273 = vst [vmem:[#allocation2 + $0x58] sm:$0xff] 0.0
          %274 = vst [vmem:[#allocation2 + $0x60] sm:$0xff] 0.0
          %275 = vst [vmem:[#allocation2 + $0x68] sm:$0xff] 0.0
          %276 = vst [vmem:[#allocation2 + $0x70] sm:$0xff] 0.0
          %277 = vst [vmem:[#allocation2 + $0x78] sm:$0xff] 0.0
        $region74: #{tpu_custom_call.1} parent=65 // pred_fallthru
          _
        %s278 = smul.u32 %s22, 128
        %s279 = sshra.s32 %s278, 3
        %s280 = sand.u32 %s278, 7
        %s281 = smul.addr %s279, 4
        %s282 = scalar_lea.vmem %s2, %s281
        %v283 = vld [vmem:[%s282] sm:$0xf]
        %v284 = vld [vmem:[%s282 + $0x4] sm:$0xf]
        %v285 = vld [vmem:[%s282 + $0x8] sm:$0xf]
        %v286 = vld [vmem:[%s282 + $0xc] sm:$0xf]
        %v287 = vld [vmem:[%s282 + $0x10] sm:$0xf]
        %v288 = vld [vmem:[%s282 + $0x14] sm:$0xf]
        %v289 = vld [vmem:[%s282 + $0x18] sm:$0xf]
        %v290 = vld [vmem:[%s282 + $0x1c] sm:$0xf]
        %v291 = vld [vmem:[%s282 + $0x20] sm:$0xf]
        %v292 = vld [vmem:[%s282 + $0x24] sm:$0xf]
        %v293 = vld [vmem:[%s282 + $0x28] sm:$0xf]
        %v294 = vld [vmem:[%s282 + $0x2c] sm:$0xf]
        %v295 = vld [vmem:[%s282 + $0x30] sm:$0xf]
        %v296 = vld [vmem:[%s282 + $0x34] sm:$0xf]
        %v297 = vld [vmem:[%s282 + $0x38] sm:$0xf]
        %v298 = vld [vmem:[%s282 + $0x3c] sm:$0xf]
        %v299 = vld [vmem:[#allocation2] sm:$0xff]
        %v300 = vld [vmem:[#allocation2 + $0x8] sm:$0xff]
        %v301 = vld [vmem:[#allocation2 + $0x10] sm:$0xff]
        %v302 = vld [vmem:[#allocation2 + $0x18] sm:$0xff]
        %v303 = vld [vmem:[#allocation2 + $0x20] sm:$0xff]
        %v304 = vld [vmem:[#allocation2 + $0x28] sm:$0xff]
        %v305 = vld [vmem:[#allocation2 + $0x30] sm:$0xff]
        %v306 = vld [vmem:[#allocation2 + $0x38] sm:$0xff]
        %v307 = vld [vmem:[#allocation2 + $0x40] sm:$0xff]
        %v308 = vld [vmem:[#allocation2 + $0x48] sm:$0xff]
        %v309 = vld [vmem:[#allocation2 + $0x50] sm:$0xff]
        %v310 = vld [vmem:[#allocation2 + $0x58] sm:$0xff]
        %v311 = vld [vmem:[#allocation2 + $0x60] sm:$0xff]
        %v312 = vld [vmem:[#allocation2 + $0x68] sm:$0xff]
        %v313 = vld [vmem:[#allocation2 + $0x70] sm:$0xff]
        %v314 = vld [vmem:[#allocation2 + $0x78] sm:$0xff]
        %v315 = vld [vmem:[%s223] sm:$0xff]
        %v316 = vld [vmem:[%s223 + $0x8] sm:$0xff]
        %v317 = vld [vmem:[%s223 + $0x10] sm:$0xff]
        %v318 = vld [vmem:[%s223 + $0x18] sm:$0xff]
        %v319 = vunpack.c.l.s8.bf16 %v315
        %v320 = vunpack.c.h.s8.bf16 %v315
        %v321 = vunpack.c.l.s8.bf16 %v316
        %v322 = vunpack.c.h.s8.bf16 %v316
        %v323 = vunpack.c.l.s8.bf16 %v317
        %v324 = vunpack.c.h.s8.bf16 %v317
        %v325 = vunpack.c.l.s8.bf16 %v318
        %v326 = vunpack.c.h.s8.bf16 %v318
        %v343 = vunpack.c.l.b16 %v283
        %v344 = vunpack.c.l.b16 %v284
        %v345 = vunpack.c.l.b16 %v285
        %v346 = vunpack.c.l.b16 %v286
        %v347 = vunpack.c.l.b16 %v287
        %v348 = vunpack.c.l.b16 %v288
        %v349 = vunpack.c.l.b16 %v289
        %v350 = vunpack.c.l.b16 %v290
        %v351 = vunpack.c.l.b16 %v291
        %v352 = vunpack.c.l.b16 %v292
        %v353 = vunpack.c.l.b16 %v293
        %v354 = vunpack.c.l.b16 %v294
        %v355 = vunpack.c.l.b16 %v295
        %v356 = vunpack.c.l.b16 %v296
        %v357 = vunpack.c.l.b16 %v297
        %v358 = vunpack.c.l.b16 %v298
        %v359 = vpack.c.b16 %v344, %v343
        %v360 = vpack.c.b16 %v346, %v345
        %v361 = vpack.c.b16 %v348, %v347
        %v362 = vpack.c.b16 %v350, %v349
        %v363 = vpack.c.b16 %v352, %v351
        %v364 = vpack.c.b16 %v354, %v353
        %v365 = vpack.c.b16 %v356, %v355
        %v366 = vpack.c.b16 %v358, %v357
        %375 = vmatprep.subr.bf16.mxu0 0
        %376 = vmatpush1.bf16.msra.mxu0 %v366
        %377 = vmatprep.subr.bf16.mxu0 0
        %378 = vmatpush1.bf16.msra.mxu0 %v365
        %379 = vmatprep.subr.bf16.mxu0 0
        %380 = vmatpush1.bf16.msra.mxu0 %v364
        %381 = vmatprep.subr.bf16.mxu0 0
        %382 = vmatpush1.bf16.msra.mxu0 %v363
        %383 = vmatprep.subr.bf16.mxu0 0
        %384 = vmatpush1.bf16.msra.mxu0 %v362
        %385 = vmatprep.subr.bf16.mxu0 0
        %386 = vmatpush1.bf16.msra.mxu0 %v361
        %387 = vmatprep.subr.bf16.mxu0 0
        %388 = vmatpush1.bf16.msra.mxu0 %v360
        %389 = vmatprep.subr.bf16.mxu0 0
        %390 = vmatpush1.bf16.msra.mxu0 %v359
        %391 = vmatprep.subr.bf16.mxu0 0
        %392 = vmatpush2.bf16.msra.mxu0 0
        %393 = vmatprep.subr.bf16.mxu0 0
        %394 = vmatpush2.bf16.msra.mxu0 0
        %395 = vmatprep.subr.bf16.mxu0 0
        %396 = vmatpush2.bf16.msra.mxu0 0
        %397 = vmatprep.subr.bf16.mxu0 0
        %398 = vmatpush2.bf16.msra.mxu0 0
        %399 = vmatprep.subr.bf16.mxu0 0
        %400 = vmatpush2.bf16.msra.mxu0 0
        %401 = vmatprep.subr.bf16.mxu0 0
        %402 = vmatpush2.bf16.msra.mxu0 0
        %403 = vmatprep.subr.bf16.mxu0 0
        %404 = vmatpush2.bf16.msra.mxu0 0
        %405 = vmatprep.subr.bf16.mxu0 0
        %406 = vmatpush2.bf16.msra.mxu0 0
        %407 = vmatprep.mubr.bf16.mxu0 0
        %408 = vmatmul.mubr.bf16.gmra.mxu0 %v319
        %v409 = vpop.f32.mrf.mxu0
        %v410 = vadd.f32 0.0, %v409
        %v411 = vpop.f32.mrf.mxu0
        %v412 = vpop.f32.mrf.mxu0
        %v413 = vadd.f32 0.0, %v412
        %v414 = vpop.f32.mrf.mxu0
        %415 = vmatprep.mubr.bf16.mxu0 0
        %416 = vmatmul.mubr.bf16.gmra.mxu0 %v320
        %v417 = vpop.f32.mrf.mxu0
        %v418 = vadd.f32 0.0, %v417
        %v419 = vpop.f32.mrf.mxu0
        %v420 = vpop.f32.mrf.mxu0
        %v421 = vadd.f32 0.0, %v420
        %v422 = vpop.f32.mrf.mxu0
        %423 = vmatprep.mubr.bf16.mxu0 0
        %424 = vmatmul.mubr.bf16.gmra.mxu0 %v321
        %v425 = vpop.f32.mrf.mxu0
        %v426 = vadd.f32 0.0, %v425
        %v427 = vpop.f32.mrf.mxu0
        %v428 = vpop.f32.mrf.mxu0
        %v429 = vadd.f32 0.0, %v428
        %v430 = vpop.f32.mrf.mxu0
        %431 = vmatprep.mubr.bf16.mxu0 0
        %432 = vmatmul.mubr.bf16.gmra.mxu0 %v322
        %v433 = vpop.f32.mrf.mxu0
        %v434 = vadd.f32 0.0, %v433
        %v435 = vpop.f32.mrf.mxu0
        %v436 = vpop.f32.mrf.mxu0
        %v437 = vadd.f32 0.0, %v436
        %v438 = vpop.f32.mrf.mxu0
        %439 = vmatprep.mubr.bf16.mxu0 0
        %440 = vmatmul.mubr.bf16.gmra.mxu0 %v323
        %v441 = vpop.f32.mrf.mxu0
        %v442 = vadd.f32 0.0, %v441
        %v443 = vpop.f32.mrf.mxu0
        %v444 = vpop.f32.mrf.mxu0
        %v445 = vadd.f32 0.0, %v444
        %v446 = vpop.f32.mrf.mxu0
        %447 = vmatprep.mubr.bf16.mxu0 0
        %448 = vmatmul.mubr.bf16.gmra.mxu0 %v324
        %v449 = vpop.f32.mrf.mxu0
        %v450 = vadd.f32 0.0, %v449
        %v451 = vpop.f32.mrf.mxu0
        %v452 = vpop.f32.mrf.mxu0
        %v453 = vadd.f32 0.0, %v452
        %v454 = vpop.f32.mrf.mxu0
        %455 = vmatprep.mubr.bf16.mxu0 0
        %456 = vmatmul.mubr.bf16.gmra.mxu0 %v325
        %v457 = vpop.f32.mrf.mxu0
        %v458 = vadd.f32 0.0, %v457
        %v459 = vpop.f32.mrf.mxu0
        %v460 = vpop.f32.mrf.mxu0
        %v461 = vadd.f32 0.0, %v460
        %v462 = vpop.f32.mrf.mxu0
        %463 = vmatprep.mubr.bf16.mxu0 0
        %464 = vmatmul.mubr.bf16.gmra.mxu0 %v326
        %v465 = vpop.f32.mrf.mxu0
        %v466 = vadd.f32 0.0, %v465
        %v467 = vpop.f32.mrf.mxu0
        %v468 = vpop.f32.mrf.mxu0
        %v469 = vadd.f32 0.0, %v468
        %v470 = vpop.f32.mrf.mxu0
        %471 = vdwg.mxu0
        %v472 = vadd.f32 %v299, %v410
        %v473 = vadd.f32 %v300, %v413
        %v474 = vadd.f32 %v301, %v418
        %v475 = vadd.f32 %v302, %v421
        %v476 = vadd.f32 %v303, %v426
        %v477 = vadd.f32 %v304, %v429
        %v478 = vadd.f32 %v305, %v434
        %v479 = vadd.f32 %v306, %v437
        %v480 = vadd.f32 %v307, %v442
        %v481 = vadd.f32 %v308, %v445
        %v482 = vadd.f32 %v309, %v450
        %v483 = vadd.f32 %v310, %v453
        %v484 = vadd.f32 %v311, %v458
        %v485 = vadd.f32 %v312, %v461
        %v486 = vadd.f32 %v313, %v466
        %v487 = vadd.f32 %v314, %v469
        %488 = vst [vmem:[#allocation2] sm:$0xff] %v472
        %489 = vst [vmem:[#allocation2 + $0x8] sm:$0xff] %v473
        %490 = vst [vmem:[#allocation2 + $0x10] sm:$0xff] %v474
        %491 = vst [vmem:[#allocation2 + $0x18] sm:$0xff] %v475
        %492 = vst [vmem:[#allocation2 + $0x20] sm:$0xff] %v476
        %493 = vst [vmem:[#allocation2 + $0x28] sm:$0xff] %v477
        %494 = vst [vmem:[#allocation2 + $0x30] sm:$0xff] %v478
        %495 = vst [vmem:[#allocation2 + $0x38] sm:$0xff] %v479
        %496 = vst [vmem:[#allocation2 + $0x40] sm:$0xff] %v480
        %497 = vst [vmem:[#allocation2 + $0x48] sm:$0xff] %v481
        %498 = vst [vmem:[#allocation2 + $0x50] sm:$0xff] %v482
        %499 = vst [vmem:[#allocation2 + $0x58] sm:$0xff] %v483
        %500 = vst [vmem:[#allocation2 + $0x60] sm:$0xff] %v484
        %501 = vst [vmem:[#allocation2 + $0x68] sm:$0xff] %v485
        %502 = vst [vmem:[#allocation2 + $0x70] sm:$0xff] %v486
        %503 = vst [vmem:[#allocation2 + $0x78] sm:$0xff] %v487
        %p504 = scmp.eq.s32.totalorder %s22, 1
        // Predicated region
        $region75: #{tpu_custom_call.1} parent=65 // pred_check
          %p505 = pneg %p504
        $region76: #{tpu_custom_call.1} parent=65 // pred_check_branch
          %507 = sbr.rel (%p505) target = $region78
        $region77: #{tpu_custom_call.1} parent=65 // pred_region
          %v508 = vld [vmem:[%s253] sm:$0xff]
          %v509 = vld [vmem:[%s253 + $0x8] sm:$0xff]
          %v510 = vld [vmem:[%s253 + $0x10] sm:$0xff]
          %v511 = vld [vmem:[%s253 + $0x18] sm:$0xff]
          %v512 = vld [vmem:[%s253 + $0x20] sm:$0xff]
          %v513 = vld [vmem:[%s253 + $0x28] sm:$0xff]
          %v514 = vld [vmem:[%s253 + $0x30] sm:$0xff]
          %v515 = vld [vmem:[%s253 + $0x38] sm:$0xff]
          %v516 = vld [vmem:[%s253 + $0x40] sm:$0xff]
          %v517 = vld [vmem:[%s253 + $0x48] sm:$0xff]
          %v518 = vld [vmem:[%s253 + $0x50] sm:$0xff]
          %v519 = vld [vmem:[%s253 + $0x58] sm:$0xff]
          %v520 = vld [vmem:[%s253 + $0x60] sm:$0xff]
          %v521 = vld [vmem:[%s253 + $0x68] sm:$0xff]
          %v522 = vld [vmem:[%s253 + $0x70] sm:$0xff]
          %v523 = vld [vmem:[%s253 + $0x78] sm:$0xff]
          %v524 = vld [vmem:[#allocation2] sm:$0xff]
          %v525 = vld [vmem:[#allocation2 + $0x8] sm:$0xff]
          %v526 = vld [vmem:[#allocation2 + $0x10] sm:$0xff]
          %v527 = vld [vmem:[#allocation2 + $0x18] sm:$0xff]
          %v528 = vld [vmem:[#allocation2 + $0x20] sm:$0xff]
          %v529 = vld [vmem:[#allocation2 + $0x28] sm:$0xff]
          %v530 = vld [vmem:[#allocation2 + $0x30] sm:$0xff]
          %v531 = vld [vmem:[#allocation2 + $0x38] sm:$0xff]
          %v532 = vld [vmem:[#allocation2 + $0x40] sm:$0xff]
          %v533 = vld [vmem:[#allocation2 + $0x48] sm:$0xff]
          %v534 = vld [vmem:[#allocation2 + $0x50] sm:$0xff]
          %v535 = vld [vmem:[#allocation2 + $0x58] sm:$0xff]
          %v536 = vld [vmem:[#allocation2 + $0x60] sm:$0xff]
          %v537 = vld [vmem:[#allocation2 + $0x68] sm:$0xff]
          %v538 = vld [vmem:[#allocation2 + $0x70] sm:$0xff]
          %v539 = vld [vmem:[#allocation2 + $0x78] sm:$0xff]
          %v540 = vmul.f32 %v508, %v508
          %v541 = vmul.f32 %v509, %v509
          %v542 = vmul.f32 %v510, %v510
          %v543 = vmul.f32 %v511, %v511
          %v544 = vmul.f32 %v512, %v512
          %v545 = vmul.f32 %v513, %v513
          %v546 = vmul.f32 %v514, %v514
          %v547 = vmul.f32 %v515, %v515
          %v548 = vmul.f32 %v516, %v516
          %v549 = vmul.f32 %v517, %v517
          %v550 = vmul.f32 %v518, %v518
          %v551 = vmul.f32 %v519, %v519
          %v552 = vmul.f32 %v520, %v520
          %v553 = vmul.f32 %v521, %v521
          %v554 = vmul.f32 %v522, %v522
          %v555 = vmul.f32 %v523, %v523
          %557 = vset.pattern.permute.xlu0 0
          %558 = vperm.xlu0 %557, %v540
          %v559 = vpop.permute.xlu0 %558
          %562 = vset.pattern.permute.xlu0 0
          %563 = vperm.xlu0 %562, %v541
          %v564 = vpop.permute.xlu0 %563
          %567 = vset.pattern.permute.xlu0 0
          %568 = vperm.xlu0 %567, %v542
          %v569 = vpop.permute.xlu0 %568
          %572 = vset.pattern.permute.xlu0 0
          %573 = vperm.xlu0 %572, %v543
          %v574 = vpop.permute.xlu0 %573
          %577 = vset.pattern.permute.xlu0 0
          %578 = vperm.xlu0 %577, %v544
          %v579 = vpop.permute.xlu0 %578
          %582 = vset.pattern.permute.xlu0 0
          %583 = vperm.xlu0 %582, %v545
          %v584 = vpop.permute.xlu0 %583
          %587 = vset.pattern.permute.xlu0 0
          %588 = vperm.xlu0 %587, %v546
          %v589 = vpop.permute.xlu0 %588
          %592 = vset.pattern.permute.xlu0 0
          %593 = vperm.xlu0 %592, %v547
          %v594 = vpop.permute.xlu0 %593
          %597 = vset.pattern.permute.xlu0 0
          %598 = vperm.xlu0 %597, %v548
          %v599 = vpop.permute.xlu0 %598
          %602 = vset.pattern.permute.xlu0 0
          %603 = vperm.xlu0 %602, %v549
          %v604 = vpop.permute.xlu0 %603
          %607 = vset.pattern.permute.xlu0 0
          %608 = vperm.xlu0 %607, %v550
          %v609 = vpop.permute.xlu0 %608
          %612 = vset.pattern.permute.xlu0 0
          %613 = vperm.xlu0 %612, %v551
          %v614 = vpop.permute.xlu0 %613
          %617 = vset.pattern.permute.xlu0 0
          %618 = vperm.xlu0 %617, %v552
          %v619 = vpop.permute.xlu0 %618
          %622 = vset.pattern.permute.xlu0 0
          %623 = vperm.xlu0 %622, %v553
          %v624 = vpop.permute.xlu0 %623
          %627 = vset.pattern.permute.xlu0 0
          %628 = vperm.xlu0 %627, %v554
          %v629 = vpop.permute.xlu0 %628
          %632 = vset.pattern.permute.xlu0 0
          %633 = vperm.xlu0 %632, %v555
          %v634 = vpop.permute.xlu0 %633
          %v636 = vmul.f32 %v524, %v559
          %v637 = vmul.f32 %v525, %v564
          %v638 = vmul.f32 %v526, %v569
          %v639 = vmul.f32 %v527, %v574
          %v640 = vmul.f32 %v528, %v579
          %v641 = vmul.f32 %v529, %v584
          %v642 = vmul.f32 %v530, %v589
          %v643 = vmul.f32 %v531, %v594
          %v644 = vmul.f32 %v532, %v599
          %v645 = vmul.f32 %v533, %v604
          %v646 = vmul.f32 %v534, %v609
          %v647 = vmul.f32 %v535, %v614
          %v648 = vmul.f32 %v536, %v619
          %v649 = vmul.f32 %v537, %v624
          %v650 = vmul.f32 %v538, %v629
          %v651 = vmul.f32 %v539, %v634
          %v652 = vpack.c.bf16 %v637, %v636
          %v653 = vpack.c.bf16 %v639, %v638
          %v654 = vpack.c.bf16 %v641, %v640
          %v655 = vpack.c.bf16 %v643, %v642
          %v656 = vpack.c.bf16 %v645, %v644
          %v657 = vpack.c.bf16 %v647, %v646
          %v658 = vpack.c.bf16 %v649, %v648
          %v659 = vpack.c.bf16 %v651, %v650
          %v668 = vunpack.c.l.b16 %v652
          %v669 = vunpack.c.h.b16 %v652
          %v670 = vunpack.c.l.b16 %v653
          %v671 = vunpack.c.h.b16 %v653
          %v672 = vunpack.c.l.b16 %v654
          %v673 = vunpack.c.h.b16 %v654
          %v674 = vunpack.c.l.b16 %v655
          %v675 = vunpack.c.h.b16 %v655
          %v676 = vunpack.c.l.b16 %v656
          %v677 = vunpack.c.h.b16 %v656
          %v678 = vunpack.c.l.b16 %v657
          %v679 = vunpack.c.h.b16 %v657
          %v680 = vunpack.c.l.b16 %v658
          %v681 = vunpack.c.h.b16 %v658
          %v682 = vunpack.c.l.b16 %v659
          %v683 = vunpack.c.h.b16 %v659
          %v684 = vpack.c.b16 %v668, %v668
          %v685 = vpack.c.b16 %v669, %v669
          %v686 = vpack.c.b16 %v670, %v670
          %v687 = vpack.c.b16 %v671, %v671
          %v688 = vpack.c.b16 %v672, %v672
          %v689 = vpack.c.b16 %v673, %v673
          %v690 = vpack.c.b16 %v674, %v674
          %v691 = vpack.c.b16 %v675, %v675
          %v692 = vpack.c.b16 %v676, %v676
          %v693 = vpack.c.b16 %v677, %v677
          %v694 = vpack.c.b16 %v678, %v678
          %v695 = vpack.c.b16 %v679, %v679
          %v696 = vpack.c.b16 %v680, %v680
          %v697 = vpack.c.b16 %v681, %v681
          %v698 = vpack.c.b16 %v682, %v682
          %v699 = vpack.c.b16 %v683, %v683
          %716 = vst [vmem:[%s248] sm:$0xf] %v684
          %717 = vst [vmem:[%s248 + $0x4] sm:$0xf] %v685
          %718 = vst [vmem:[%s248 + $0x8] sm:$0xf] %v686
          %719 = vst [vmem:[%s248 + $0xc] sm:$0xf] %v687
          %720 = vst [vmem:[%s248 + $0x10] sm:$0xf] %v688
          %721 = vst [vmem:[%s248 + $0x14] sm:$0xf] %v689
          %722 = vst [vmem:[%s248 + $0x18] sm:$0xf] %v690
          %723 = vst [vmem:[%s248 + $0x1c] sm:$0xf] %v691
          %724 = vst [vmem:[%s248 + $0x20] sm:$0xf] %v692
          %725 = vst [vmem:[%s248 + $0x24] sm:$0xf] %v693
          %726 = vst [vmem:[%s248 + $0x28] sm:$0xf] %v694
          %727 = vst [vmem:[%s248 + $0x2c] sm:$0xf] %v695
          %728 = vst [vmem:[%s248 + $0x30] sm:$0xf] %v696
          %729 = vst [vmem:[%s248 + $0x34] sm:$0xf] %v697
          %730 = vst [vmem:[%s248 + $0x38] sm:$0xf] %v698
          %731 = vst [vmem:[%s248 + $0x3c] sm:$0xf] %v699
        $region78: #{tpu_custom_call.1} parent=65 // pred_fallthru
          _
        %s732 = sand.u32 %s112, 1
        %s733 = scalar_lea.sflag [#allocation5], %s732
        %s734 = sand.u32 %s112, 1
        %s735 = smul.addr %s734, 64
        %s736 = scalar_lea.vmem [#allocation4], %s735
        // Predicated region
        $region79: #{tpu_custom_call.1} parent=65 // pred_check
          %p737 = pneg %p122
        $region80: #{tpu_custom_call.1} parent=65 // pred_check_branch
          %739 = sbr.rel (%p737) target = $region82
        $region81: #{tpu_custom_call.1} parent=65 // pred_region
          %s740 = smul.u32 16, %s21
          %s742 = ssub.s32 1024, 1024
          %743 = vsyncadd %s733, %s742
          %s744 = smul.addr %s740, 64
          %s745 = scalar_lea.hbm %s3, %s744
          %s746 = sshll.u32 %s736, 4
          %s747 = int_to_ptr.vmem [resolvable:$true] %s746
          %752 = dma.vmem_to_hbm [thread:$0]  %s747, 1024, %s745, %s733, 64, 64, 4
        $region82: #{tpu_custom_call.1} parent=65 // pred_fallthru
          _
      $region66: #{tpu_custom_call.1} parent=5 // pred_fallthru
        _
      %p753 = scmp.le.s32.totalorder 2, %s12
      // Predicated region
      $region83: #{tpu_custom_call.1} parent=5 // pred_check
        %p754 = pneg %p753
      $region84: #{tpu_custom_call.1} parent=5 // pred_check_branch
        %756 = sbr.rel (%p754) target = $region86
      $region85: #{tpu_custom_call.1} parent=5 // pred_region
        %s757 = ssub.s32 %s12, 2
        // Predicated region
        $region87: #{tpu_custom_call.1} parent=85 // pred_check
          %p758 = pneg %p128
        $region88: #{tpu_custom_call.1} parent=85 // pred_check_branch
          %760 = sbr.rel (%p758) target = $region90
        $region89: #{tpu_custom_call.1} parent=85 // pred_region
          %s761 = sand.u32 %s113, 1
          %s762 = scalar_lea.sflag [#allocation5], %s761
          %s763 = sand.u32 %s113, 1
          %s764 = smul.addr %s763, 64
          %s765 = scalar_lea.vmem [#allocation4], %s764
          %766 = dma.done %s762, 1024
        $region90: #{tpu_custom_call.1} parent=85 // pred_fallthru
          _
      $region86: #{tpu_custom_call.1} parent=5 // pred_fallthru
        _
    $region6: #{tpu_custom_call.1} parent=1 // loop_footer
      %s16 = sadd.s32 1, %s12
    $region7: #{tpu_custom_call.1} parent=1 // loop_footer_branch
      %11 = sbr.rel target = $region3
    $region8: #{tpu_custom_call.1} parent=1 // loop_exit
      _
    %767 = vsyncpa [#allocation5], 1
    %s768 = scalar_lea.sflag [#allocation5], 1
    %769 = vsyncpa %s768, 1

</llo_original>
